<compile_context>
chip_gen: v7x
topology: tpu7x:2x2x1
jax: 0.10.0
libtpu: 0.0.40
codegen_flags: <defaults>
</compile_context>

<pallas_src>
import jax
import jax.numpy as jnp
from jax.experimental import pallas as pl
from jax.experimental.pallas import tpu as pltpu


def _variant_sigmoid_kernel(alpha_ref, x_ref, o_ref):
    # alpha lives in SMEM (scalar prefetch); broadcast once per block.
    alpha = alpha_ref[0]
    xf = x_ref[...].astype(jnp.float32)
    denom = 1.0 + jnp.exp(-alpha * xf)            # exp -> EUP
    y = pl.reciprocal(denom, approx=True)         # EUP vrcp; VALU stays free
    o_ref[...] = y.astype(o_ref.dtype)


def _round_up(v, m):
    return ((v + m - 1) // m) * m


def variant_sigmoid(x, alpha):
    """Applies y = 1/(1+exp(-alpha*x)) elementwise via a Pallas TPU kernel.

    x: any-rank array (e.g. NCHW). alpha: Python/NumPy float (runtime scalar).
    """
    orig_shape = x.shape
    orig_dtype = x.dtype
    total = x.size
    if total == 0:
        return x

    itemsize = jnp.dtype(orig_dtype).itemsize

    # ---- Lane width: largest of {1024,512,256,128} dividing total  ----------
    # (hits the zero-copy no-pad path for essentially all real tensor sizes).
    cols = None
    for c in (1024, 512, 256, 128):
        if total % c == 0:
            cols = c
            break
    needs_pad = cols is None
    if needs_pad:
        cols = 128  # minimize padding: < 128 extra elements

    flat = x.reshape(-1)
    rows = -(-total // cols)                      # cdiv
    padded_total = rows * cols
    if needs_pad:
        # Rare fallback (size not divisible by 128); costs one extra copy.
        flat = jnp.pad(flat, (0, padded_total - total))
    x2 = flat.reshape(rows, cols)

    # ---- Row tile: <= ~4 MiB block, but >= ~8 grid steps when possible ------
    max_block_elems = (4 * 1024 * 1024) // itemsize
    max_tm = max(8, (max_block_elems // cols) // 8 * 8)
    target_steps = 8                              # keep both v7x TCs fed
    tm_for_steps = max(8, _round_up(-(-rows // target_steps), 8))
    tm = min(max_tm, tm_for_steps)
    if tm >= rows:
        tm = rows                                 # full-extent block (always legal)
    grid = (pl.cdiv(rows, tm),)                   # partial last block is masked

    alpha_arr = jnp.asarray([alpha], dtype=jnp.float32)  # SMEM scalar

    cost = pl.CostEstimate(
        flops=4 * padded_total,
        transcendentals=padded_total,
        bytes_accessed=2 * padded_total * itemsize,
    )

    y2 = pl.pallas_call(
        _variant_sigmoid_kernel,
        out_shape=jax.ShapeDtypeStruct((rows, cols), orig_dtype),
        grid_spec=pltpu.PrefetchScalarGridSpec(
            num_scalar_prefetch=1,
            grid=grid,
            # index_maps receive the scalar-prefetch ref as a trailing arg.
            in_specs=[pl.BlockSpec((tm, cols), lambda i, a_ref: (i, 0))],
            out_specs=pl.BlockSpec((tm, cols), lambda i, a_ref: (i, 0)),
        ),
        compiler_params=pltpu.CompilerParams(
            dimension_semantics=("parallel",),
            vmem_limit_bytes=32 * 1024 * 1024,    # room for 4 MiB double-buffered tiles
        ),
        cost_estimate=cost,
    )(alpha_arr, x2)

    if needs_pad:
        return y2.reshape(-1)[:total].reshape(orig_shape)
    return y2.reshape(orig_shape)                 # pure metadata on the fast path


if __name__ == "__main__":
    key = jax.random.PRNGKey(0)
    # NCHW input consistent with a typical conv-activation usage.
    x = jax.random.normal(key, (2, 4, 16, 16), dtype=jnp.float32)
    alpha = 1.5

    y = variant_sigmoid(x, alpha)
    y = jax.block_until_ready(y)

    # Sanity check against a plain-JAX reference of the PyTorch forward.
    # approx reciprocal => allow ~1e-3 deviation (outputs are in [0, 1]).
    y_ref = 1.0 / (1.0 + jnp.exp(-alpha * x))
    assert y.shape == x.shape and y.dtype == x.dtype
    assert jnp.allclose(y, y_ref, atol=2e-3, rtol=2e-3)

    print("KERNEL_OK")
</pallas_src>

<mosaic_0001>
module attributes {stable_mosaic.version = 11 : i64} {
  func.func @_variant_sigmoid_kernel(%arg0: i32, %arg1: memref<1xf32, #tpu.memory_space<smem>>, %arg2: memref<2x1024xf32, #tpu.memory_space<vmem>>, %arg3: memref<2x1024xf32, #tpu.memory_space<vmem>>) attributes {dimension_semantics = [#tpu.dimension_semantics<parallel>], iteration_bounds = array<i64: 1>, scalar_prefetch = 1 : i64, scratch_operands = 0 : i64, tpu.core_type = #tpu.core_type<tc>, window_params = [{transform_indices = @transform_0, window_bounds = array<i64: 2, 1024>}, {transform_indices = @transform_1, window_bounds = array<i64: 2, 1024>}]} {
    %c0 = arith.constant 0 : index
    %0 = memref.load %arg1[%c0] : memref<1xf32, #tpu.memory_space<smem>>
    %c0_0 = arith.constant 0 : index
    %c0_1 = arith.constant 0 : index
    %1 = vector.load %arg2[%c0_0, %c0_1] : memref<2x1024xf32, #tpu.memory_space<vmem>>, vector<2x1024xf32>
    %cst = arith.constant 0.000000e+00 : f32
    %2 = arith.subf %cst, %0 : f32
    %3 = vector.broadcast %2 : f32 to vector<2x1024xf32>
    %4 = arith.mulf %3, %1 : vector<2x1024xf32>
    %5 = math.exp %4 : vector<2x1024xf32>
    %cst_2 = arith.constant 1.000000e+00 : f32
    %6 = vector.broadcast %cst_2 : f32 to vector<2x1024xf32>
    %7 = arith.addf %6, %5 : vector<2x1024xf32>
    %8 = tpu.reciprocal %7 {approx = true} : vector<2x1024xf32> -> vector<2x1024xf32>
    %c0_3 = arith.constant 0 : index
    %c0_4 = arith.constant 0 : index
    %9 = vector.load %arg3[%c0_3, %c0_4] : memref<2x1024xf32, #tpu.memory_space<vmem>>, vector<2x1024xf32>
    tpu.vector_store %arg3[%c0_3, %c0_4], %8 {strides = array<i32>} : memref<2x1024xf32, #tpu.memory_space<vmem>>, vector<2x1024xf32>,
    return
  }
  func.func @transform_0(%arg0: i32, %arg1: memref<1xf32, #tpu.memory_space<smem>>) -> (i32, i32) {
    %c0_i32 = arith.constant 0 : i32
    %c0_i32_0 = arith.constant 0 : i32
    return %arg0, %c0_i32 : i32, i32
  }
  func.func @transform_1(%arg0: i32, %arg1: memref<1xf32, #tpu.memory_space<smem>>) -> (i32, i32) {
    %c0_i32 = arith.constant 0 : i32
    %c0_i32_0 = arith.constant 0 : i32
    return %arg0, %c0_i32 : i32, i32
  }
}

</mosaic_0001>

<llo_original>
// kernel: tpu_custom_call.1
$region0: #{tpu_custom_call.1}
  #allocation0 [shape = 'u32[]', space=smem, size = 0x4, offset = 0x4, fixed_abs, tag = 'smem constant byte address 0x4 - core index']
  #allocation1 [shape = 'u32[144,128]{1,0:T(1,128)}', space=vmem, size = 0x12000, scoped, tag = 'internal scratch']
  #allocation2 [shape = 's32[1]{0}', space=sflag, size = 0x4, scoped, tag = 'scoped memory for tpu_custom_call.1']
  #allocation3 [shape = 'f32[1]{0:T(128)S(6)}', space=smem, size = 0x200, scoped, tag = 'prefetched SMEM operand 0']
  %s0 = inlined_call_operand.<no memory space> [shape: f32[1], index: 0, kind: input, shape index: {}]
  %s1 = inlined_call_operand.hbm [shape: f32[2,1024], index: 1, kind: input, shape index: {}]
  %s2 = inlined_call_operand.hbm [shape: f32[2,1024], index: 2, kind: output, shape index: {}]
  %s3 = sld [smem:[#allocation0]]
  $region18: #{tpu_custom_call.1} parent=0
    _
  %s5 = ssub.s32 1, %s3
  %s6 = scalar_select 0, %s5, %s3
  %7 = sst [smem:[#allocation3]] %s0
  $region1: #{tpu_custom_call.1} parent=0
    #allocation4 [shape = 'u8[8192]{0}', space=vmem, size = 0x2000, scoped, tag = 'input window, operand 1, single buffered']
    #allocation5 [shape = 's32[1]{0}', space=sflag, size = 0x4, scoped, tag = 'scoped memory for tpu_custom_call.1']
    #allocation6 [shape = 's32[1]{0}', space=sflag, size = 0x4, scoped, tag = 'scoped memory for tpu_custom_call.1']
    #allocation7 [shape = 'u8[8192]{0}', space=vmem, size = 0x2000, scoped, tag = 'output window, operand 0, single buffered']
    %8 = vsyncpa [#allocation5], 0
    %9 = vsyncpa [#allocation6], 0
    // Predicated region
    $region2: #{tpu_custom_call.1} parent=1 // pred_check
      _
    $region3: #{tpu_custom_call.1} parent=1 // pred_check_branch
      %11 = sbr.rel (0) target = $region5
    $region4: #{tpu_custom_call.1} parent=1 // pred_region
      %s13 = ssub.s32 256, 256
      %14 = vsyncadd [#allocation5], %s13
      %s16 = sshll.u32 [#allocation4], 4
      %s17 = int_to_ptr.vmem [resolvable:$true] %s16
      %19 = dma.hbm_to_vmem [thread:$0]  %s1, 256, %s17, [#allocation5]
    $region5: #{tpu_custom_call.1} parent=1 // pred_fallthru
      _
    // Predicated region
    $region6: #{tpu_custom_call.1} parent=1 // pred_check
      _
    $region7: #{tpu_custom_call.1} parent=1 // pred_check_branch
      %21 = sbr.rel (0) target = $region9
    $region8: #{tpu_custom_call.1} parent=1 // pred_region
      %22 = dma.done [#allocation5], 256
    $region9: #{tpu_custom_call.1} parent=1 // pred_fallthru
      _
    %s23 = sld [smem:[#allocation3]]
    %v24 = vld [vmem:[#allocation4] sm:$0xff]
    %v25 = vld [vmem:[#allocation4 + $0x8] sm:$0xff]
    %s26 = ssub.f32 0.0, %s23
    %v27 = vstv %s26
    %v28 = vmul.f32 %v27, %v24
    %v29 = vmul.f32 %v27, %v25
    %v30 = vmul.f32 %v28, 1.442695
    %v31 = vpow.pop %v30
    %v32 = vmul.f32 %v29, 1.442695
    %v33 = vpow.pop %v32
    %v34 = vadd.f32 %v31, 1.0
    %v35 = vadd.f32 %v33, 1.0
    %v36 = vrcp.pop %v34
    %v37 = vrcp.pop %v35
    %38 = vst [vmem:[#allocation7] sm:$0xff] %v36
    %39 = vst [vmem:[#allocation7 + $0x8] sm:$0xff] %v37
    // Predicated region
    $region10: #{tpu_custom_call.1} parent=1 // pred_check
      _
    $region11: #{tpu_custom_call.1} parent=1 // pred_check_branch
      %41 = sbr.rel (0) target = $region13
    $region12: #{tpu_custom_call.1} parent=1 // pred_region
      %s43 = ssub.s32 256, 256
      %44 = vsyncadd [#allocation6], %s43
      %s46 = sshll.u32 [#allocation7], 4
      %s47 = int_to_ptr.vmem [resolvable:$true] %s46
      %49 = dma.vmem_to_hbm [thread:$0]  %s47, 256, %s2, [#allocation6]
    $region13: #{tpu_custom_call.1} parent=1 // pred_fallthru
      _
    // Predicated region
    $region14: #{tpu_custom_call.1} parent=1 // pred_check
      _
    $region15: #{tpu_custom_call.1} parent=1 // pred_check_branch
      %51 = sbr.rel (0) target = $region17
    $region16: #{tpu_custom_call.1} parent=1 // pred_region
      %52 = dma.done [#allocation6], 256
    $region17: #{tpu_custom_call.1} parent=1 // pred_fallthru
      _
    %53 = vsyncpa [#allocation5], 1
    %54 = vsyncpa [#allocation6], 1

</llo_original>
